<compile_context>
chip_gen: v6e
topology: v6e:2x2x1
jax: 0.10.0
libtpu: 0.0.40
codegen_flags: <defaults>
</compile_context>

<pallas_src>
import functools
import math

import jax
import jax.numpy as jnp
from jax import lax
from jax.experimental import pallas as pl
from jax.experimental.pallas import tpu as pltpu


def _round_up(x, m):
    return ((x + m - 1) // m) * m


# ----------------------------- tiled linear (matmul + bias) -----------------------------
def _linear_kernel(x_ref, w_ref, b_ref, o_ref):
    acc = jnp.dot(x_ref[...], w_ref[...], preferred_element_type=jnp.float32)
    o_ref[...] = (acc + b_ref[...]).astype(o_ref.dtype)


def _offatt_kernel(x_ref, w_ref, b_ref, o_ref, *, off_cols, num_groups, group_size):
    # fused sampling_offsets + attention_weights projection: raw logits for the
    # leading `off_cols` columns, grouped softmax (per head) on the trailing ones.
    logits = jnp.dot(x_ref[...], w_ref[...], preferred_element_type=jnp.float32) + b_ref[...]
    parts = [logits[:, :off_cols]]
    for g in range(num_groups):
        sl = logits[:, off_cols + g * group_size: off_cols + (g + 1) * group_size]
        mx = jnp.max(sl, axis=-1, keepdims=True)
        e = jnp.exp(sl - mx)
        parts.append(e / jnp.sum(e, axis=-1, keepdims=True))
    o_ref[...] = jnp.concatenate(parts, axis=-1).astype(o_ref.dtype)


def _tiled_linear(kernel_fn, x2d, w, b, out_dtype, *, tile_m, transcendentals=0):
    m, kdim = x2d.shape
    n = w.shape[1]
    tm = min(_round_up(max(int(tile_m), 8), 8), _round_up(m, 8))
    m_pad = _round_up(m, tm)
    if m_pad != m:
        x2d = jnp.pad(x2d, ((0, m_pad - m), (0, 0)))
    out = pl.pallas_call(
        kernel_fn,
        out_shape=jax.ShapeDtypeStruct((m_pad, n), out_dtype),
        grid=(m_pad // tm,),
        in_specs=[pl.BlockSpec((tm, kdim), lambda i: (i, 0)),
                  pl.BlockSpec((kdim, n), lambda i: (0, 0)),
                  pl.BlockSpec((1, n), lambda i: (0, 0))],
        out_specs=pl.BlockSpec((tm, n), lambda i: (i, 0)),
        compiler_params=pltpu.CompilerParams(dimension_semantics=("parallel",)),
        cost_estimate=pl.CostEstimate(
            flops=2 * m_pad * kdim * n,
            transcendentals=transcendentals,
            bytes_accessed=2 * (m_pad * kdim + kdim * n) + 4 * (m_pad * n + n)),
    )(x2d, w, b.reshape(1, n))
    return out[:m] if m_pad != m else out


def pallas_linear(x2d, w, b, *, out_dtype=jnp.float32, tile_m=512):
    return _tiled_linear(_linear_kernel, x2d, w, b, out_dtype, tile_m=tile_m)


def pallas_linear_offatt(x2d, w, b, *, num_groups, group_size, off_cols, tile_m=512):
    kern = functools.partial(_offatt_kernel, off_cols=off_cols,
                             num_groups=num_groups, group_size=group_size)
    return _tiled_linear(kern, x2d, w, b, jnp.float32, tile_m=tile_m,
                         transcendentals=x2d.shape[0] * num_groups * group_size)


# ------------------------- deformable attention core kernel -----------------------
def _deform_kernel(chunk_level_ref, chunk_first_ref, chunk_last_ref, chunk_col0_ref,
                   level_hw_ref, val_ref, coords_ref, out_ref, sv_ref,
                   acc_ref, relcol_ref, wt_ref, *, num_points):
    k = pl.program_id(1)
    lvl = chunk_level_ref[k]

    @pl.when(k == 0)
    def _():
        # per-(b, h) output accumulator + (re)build the cached chunk-column iota.
        out_ref[0] = jnp.zeros_like(out_ref[0])
        relcol_ref[...] = lax.broadcasted_iota(
            jnp.int32, relcol_ref.shape, 0).astype(jnp.float32)

    @pl.when(chunk_first_ref[k] == 1)
    def _():
        # lane-dense per-level prologue: pixel coords, validity-masked bilinear
        # corner weights and the flat base index, cached as rows of wt_ref
        # (direct row stores, no concatenate).
        c = coords_ref[0, 0]                                   # [3, P*Lq_pad]
        hf = level_hw_ref[lvl, 0].astype(jnp.float32)
        wf = level_hw_ref[lvl, 1].astype(jnp.float32)
        px = c[0:1, :] * wf - 0.5                              # align_corners=False
        py = c[1:2, :] * hf - 0.5
        x0 = jnp.floor(px)
        y0 = jnp.floor(py)
        lx = px - x0
        ly = py - y0
        hx = 1.0 - lx
        hy = 1.0 - ly
        vx0 = (x0 >= 0.0) & (x0 <= wf - 1.0)
        vx1 = (x0 >= -1.0) & (x0 <= wf - 2.0)
        vy0 = (y0 >= 0.0) & (y0 <= hf - 1.0)
        vy1 = (y0 >= -1.0) & (y0 <= hf - 2.0)
        wt_ref[0:1, :] = y0 * wf + x0                          # exact ints in f32
        wt_ref[1:2, :] = jnp.where(vx0 & vy0, hx * hy, 0.0)
        wt_ref[2:3, :] = jnp.where(vx1 & vy0, lx * hy, 0.0)
        wt_ref[3:4, :] = jnp.where(vx0 & vy1, hx * ly, 0.0)
        wt_ref[4:5, :] = jnp.where(vx1 & vy1, lx * ly, 0.0)
        acc_ref[...] = jnp.zeros_like(acc_ref)

    # ---- per-chunk one-hot bilinear gather, contracted on the MXU -----------------
    wf = level_hw_ref[lvl, 1].astype(jnp.float32)
    cs = chunk_col0_ref[k].astype(jnp.float32)
    rel00 = wt_ref[0:1, :] - cs                                # [1, P*Lq] row ops
    rel01 = rel00 + 1.0
    rel10 = rel00 + wf
    rel11 = rel10 + 1.0
    w00 = wt_ref[1:2, :].astype(jnp.bfloat16)                  # cheap row casts
    w01 = wt_ref[2:3, :].astype(jnp.bfloat16)
    w10 = wt_ref[3:4, :].astype(jnp.bfloat16)
    w11 = wt_ref[4:5, :].astype(jnp.bfloat16)
    col = relcol_ref[...]                                      # cached [chunk, P*Lq]
    one_hot = (jnp.where(col == rel00, w00, 0.0)
               + jnp.where(col == rel01, w01, 0.0)
               + jnp.where(col == rel10, w10, 0.0)
               + jnp.where(col == rel11, w11, 0.0))            # bf16 build, no cast
    acc_ref[...] += jnp.dot(val_ref[0],                        # [D, chunk] bf16
                            one_hot,                           # [chunk, P*Lq] bf16
                            preferred_element_type=jnp.float32)

    @pl.when(chunk_last_ref[k] == 1)
    def _():
        sampled = acc_ref[...]                                 # [D, P*Lq] f32
        attn_row = coords_ref[0, 0, 2:3, :]                    # [1, P*Lq]
        weighted = sampled * attn_row
        lqp = out_ref.shape[2]                                 # padded Lq (x128)
        contrib = weighted[:, 0:lqp]                           # lane-aligned slices
        for p in range(1, num_points):
            contrib = contrib + weighted[:, p * lqp:(p + 1) * lqp]
        out_ref[0] += contrib                                  # cross-level accumulate
        sv_ref[0, 0] = sampled                                 # lane-dense side output


def ms_deform_attn_core_pallas(value_dhw, spatial_shapes, sampling_locations, attn,
                               *, num_points, hw_chunk=1024):
    """value_dhw: [bs*Hh, D, Lv] (bf16); sampling_locations: [bs, Lq, Hh, L, P, 2];
    attn: [bs, Lq, Hh, L, P].  Returns (out [bs*Hh, D, Lq_pad] f32,
    sv [bs*Hh, L, D, P*Lq_pad] f32, Lq_pad)."""
    bh, d, lv = value_dhw.shape
    bs, lq, hh, n_lvl, p, _ = sampling_locations.shape
    lq_pad = _round_up(lq, 128)
    plq = p * lq_pad

    # lane-dense packed coordinates: [bs*Hh, L, 3, P*Lq_pad], rows = (x, y, attn);
    # padded Lq lanes carry attn = 0 so they never reach the output.
    loc_t = jnp.transpose(sampling_locations, (0, 2, 3, 5, 4, 1))   # [bs,Hh,L,2,P,Lq]
    attn_t = jnp.transpose(attn, (0, 2, 3, 4, 1))[:, :, :, None]    # [bs,Hh,L,1,P,Lq]
    coords = jnp.concatenate([loc_t, attn_t], axis=3)               # [bs,Hh,L,3,P,Lq]
    if lq_pad != lq:
        coords = jnp.pad(coords, ((0, 0),) * 5 + ((0, lq_pad - lq),))
    coords = coords.reshape(bh, n_lvl, 3, plq)

    # per-level value padding (to a multiple of the lane chunk) + chunk schedule.
    kc = max(128, (int(hw_chunk) // 128) * 128)
    chunk_level, chunk_first, chunk_last, chunk_col0 = [], [], [], []
    segs = []
    start = 0
    for lvl, (h_l, w_l) in enumerate(spatial_shapes):
        h_l, w_l = int(h_l), int(w_l)
        hw = h_l * w_l
        assert hw < 2 ** 24, "flat index must stay exact in f32"
        hw_pad = _round_up(hw, kc)
        n_chunks = hw_pad // kc
        seg = value_dhw[:, :, start:start + hw]
        if hw_pad != hw:
            seg = jnp.pad(seg, ((0, 0), (0, 0), (0, hw_pad - hw)))
        segs.append(seg)
        start += hw
        for ci in range(n_chunks):
            chunk_level.append(lvl)
            chunk_first.append(1 if ci == 0 else 0)
            chunk_last.append(1 if ci == n_chunks - 1 else 0)
            chunk_col0.append(ci * kc)
    value_pad = jnp.concatenate(segs, axis=-1) if len(segs) > 1 else segs[0]
    ktot = len(chunk_level)
    chunk_level = jnp.asarray(chunk_level, jnp.int32)
    chunk_first = jnp.asarray(chunk_first, jnp.int32)
    chunk_last = jnp.asarray(chunk_last, jnp.int32)
    chunk_col0 = jnp.asarray(chunk_col0, jnp.int32)
    level_hw = jnp.asarray([[int(h), int(w)] for h, w in spatial_shapes], jnp.int32)

    out_bh, sv_bh = pl.pallas_call(
        functools.partial(_deform_kernel, num_points=p),
        out_shape=(jax.ShapeDtypeStruct((bh, d, lq_pad), jnp.float32),
                   jax.ShapeDtypeStruct((bh, n_lvl, d, plq), jnp.float32)),
        grid_spec=pltpu.PrefetchScalarGridSpec(
            num_scalar_prefetch=5,
            grid=(bh, ktot),
            in_specs=[
                pl.BlockSpec((1, d, kc),
                             lambda b, k, cl, cf, cls, cc, lhw: (b, 0, k)),
                pl.BlockSpec((1, 1, 3, plq),
                             lambda b, k, cl, cf, cls, cc, lhw: (b, cl[k], 0, 0)),
            ],
            out_specs=[
                pl.BlockSpec((1, d, lq_pad),
                             lambda b, k, cl, cf, cls, cc, lhw: (b, 0, 0)),
                pl.BlockSpec((1, 1, d, plq),
                             lambda b, k, cl, cf, cls, cc, lhw: (b, cl[k], 0, 0)),
            ],
            scratch_shapes=[pltpu.VMEM((d, plq), jnp.float32),    # sampled accumulator
                            pltpu.VMEM((kc, plq), jnp.float32),   # cached chunk iota
                            pltpu.VMEM((8, plq), jnp.float32)]),  # flat00 + corner wts
        compiler_params=pltpu.CompilerParams(
            dimension_semantics=("parallel", "arbitrary"),
            # fits comfortably on v7x (64 MiB VMEM); raise on v5e/v6e with bigger kc.
            vmem_limit_bytes=48 * 1024 * 1024),
    )(chunk_level, chunk_first, chunk_last, chunk_col0, level_hw, value_pad, coords)
    return out_bh, sv_bh, lq_pad


# -------------------------------- parameter init -----------------------------------
def make_params(key, embed_dim, num_heads, num_levels, num_points):
    total_points = num_heads * num_levels * num_points
    # sampling_offsets: weight = 0, bias = directional grid from _reset_parameters
    w_off = jnp.zeros((embed_dim, total_points * 2), jnp.float32)
    thetas = jnp.arange(num_heads, dtype=jnp.float32) * (2.0 * math.pi / num_heads)
    grid_init = jnp.stack([jnp.cos(thetas), jnp.sin(thetas)], axis=-1)
    grid_init = grid_init / jnp.max(jnp.abs(grid_init), axis=-1, keepdims=True)
    grid_init = jnp.tile(grid_init.reshape(num_heads, 1, 1, 2),
                         (1, num_levels, num_points, 1))
    scaling = jnp.arange(1, num_points + 1, dtype=jnp.float32).reshape(1, 1, -1, 1)
    b_off = (grid_init * scaling).reshape(-1)

    w_att = jnp.zeros((embed_dim, total_points), jnp.float32)
    b_att = jnp.zeros((total_points,), jnp.float32)

    k1, k2 = jax.random.split(key)
    bound = math.sqrt(6.0 / (embed_dim + embed_dim))          # xavier_uniform
    w_val = jax.random.uniform(k1, (embed_dim, embed_dim), jnp.float32, -bound, bound)
    b_val = jnp.zeros((embed_dim,), jnp.float32)
    w_out = jax.random.uniform(k2, (embed_dim, embed_dim), jnp.float32, -bound, bound)
    b_out = jnp.zeros((embed_dim,), jnp.float32)
    return dict(w_off=w_off, b_off=b_off, w_att=w_att, b_att=b_att,
                w_val=w_val, b_val=b_val, w_out=w_out, b_out=b_out)


# ------------------------------- full forward pass ---------------------------------
def msdeform_attention_forward(params, query, reference_points, value,
                               value_spatial_shapes, value_mask=None, *,
                               num_heads, num_levels, num_points,
                               hw_chunk=1024, linear_tile_m=512):
    bs, lq, c = query.shape
    lv = value.shape[1]
    hh, n_lvl, p = num_heads, num_levels, num_points
    d = c // hh
    t = hh * n_lvl * p

    # weights pre-cast to bf16 once (never inside a kernel body)
    w_val = params["w_val"].astype(jnp.bfloat16)
    w_out = params["w_out"].astype(jnp.bfloat16)
    w_qp = jnp.concatenate([params["w_off"], params["w_att"]], axis=1).astype(jnp.bfloat16)
    b_qp = jnp.concatenate([params["b_off"], params["b_att"]], axis=0)

    # ---- value projection: bf16 activations/weights, bf16 output ----
    value_bf = value.astype(jnp.bfloat16).reshape(bs * lv, c)
    value_p = pallas_linear(value_bf, w_val, params["b_val"],
                            out_dtype=jnp.bfloat16, tile_m=linear_tile_m).reshape(bs, lv, c)
    if value_mask is not None:
        value_p = value_p * value_mask[..., None].astype(value_p.dtype)
    # [bs*Hh, D, Lv]: head-dim on sublanes, flattened HW on lanes (lane-dense gather)
    value_dhw = jnp.transpose(value_p.reshape(bs, lv, hh, d), (0, 2, 3, 1)).reshape(bs * hh, d, lv)

    # ---- fused sampling_offsets + attention_weights projection ----
    q_bf = query.astype(jnp.bfloat16).reshape(bs * lq, c)
    qp = pallas_linear_offatt(q_bf, w_qp, b_qp, num_groups=hh, group_size=n_lvl * p,
                              off_cols=2 * t, tile_m=linear_tile_m)
    off = qp[:, :2 * t].reshape(bs, lq, hh, n_lvl, p, 2)
    attn = qp[:, 2 * t:].reshape(bs, lq, hh, n_lvl, p)

    if reference_points.shape[-1] == 2:
        norm = jnp.asarray([[w_, h_] for h_, w_ in value_spatial_shapes], jnp.float32)
        loc = (reference_points[:, :, None, :, None, :]
               + off / norm[None, None, None, :, None, :])
    elif reference_points.shape[-1] == 4:
        loc = (reference_points[:, :, None, :, None, :2]
               + off / p * reference_points[:, :, None, :, None, 2:] * 0.5)
    else:
        raise ValueError("Last dim of reference_points must be 2 or 4")

    out_bh, sv_bh, lq_pad = ms_deform_attn_core_pallas(
        value_dhw, value_spatial_shapes, loc, attn, num_points=p, hw_chunk=hw_chunk)

    core_out = jnp.transpose(out_bh.reshape(bs, hh, d, lq_pad)[..., :lq],
                             (0, 3, 1, 2)).reshape(bs * lq, c)
    output = pallas_linear(core_out.astype(jnp.bfloat16), w_out, params["b_out"],
                           out_dtype=jnp.float32, tile_m=linear_tile_m).reshape(bs, lq, c)

    # TODO(synk): sampling_values layout mirrors the standard RT-DETR core func
    # (torch.stack(..., dim=-2) -> [bs*heads, head_dim, Lq, levels, points]); the
    # kernel emits it lane-dense [bs*Hh, L, D, P*Lq_pad] and this one transpose
    # could be folded into the consumer instead.
    sv = sv_bh.reshape(bs * hh, n_lvl, d, p, lq_pad)[..., :lq]
    sv = jnp.transpose(sv, (0, 2, 4, 1, 3))                     # [bs*Hh, D, Lq, L, P]
    return output, sv


# --------------------------- pure-JAX reference (checking) -------------------------
def reference_forward(params, query, reference_points, value, spatial_shapes, *,
                      num_heads, num_levels, num_points):
    hp = lax.Precision.HIGHEST
    bs, lq, c = query.shape
    lv = value.shape[1]
    hh, n_lvl, p = num_heads, num_levels, num_points
    d = c // hh

    value_hd = (jnp.dot(value, params["w_val"], precision=hp)
                + params["b_val"]).reshape(bs, lv, hh, d)
    off = (jnp.dot(query, params["w_off"], precision=hp)
           + params["b_off"]).reshape(bs, lq, hh, n_lvl, p, 2)
    logits = (jnp.dot(query, params["w_att"], precision=hp)
              + params["b_att"]).reshape(bs, lq, hh, n_lvl * p)
    attn = jax.nn.softmax(logits, axis=-1).reshape(bs, lq, hh, n_lvl, p)

    norm = jnp.asarray([[w, h] for h, w in spatial_shapes], jnp.float32)   # (W, H)
    loc = reference_points[:, :, None, :, None, :] + off / norm[None, None, None, :, None, :]

    out = jnp.zeros((bs, lq, hh, d), jnp.float32)
    sv_levels = []
    start = 0
    b_idx = jnp.arange(bs)[:, None, None, None]
    h_idx = jnp.arange(hh)[None, None, :, None]
    for lvl, (hgt, wid) in enumerate(spatial_shapes):
        v = value_hd[:, start:start + hgt * wid].reshape(bs, hgt, wid, hh, d)
        start += hgt * wid
        x = loc[:, :, :, lvl, :, 0] * wid - 0.5
        y = loc[:, :, :, lvl, :, 1] * hgt - 0.5
        x0 = jnp.floor(x)
        y0 = jnp.floor(y)
        lxw = x - x0
        lyw = y - y0
        sampled = jnp.zeros((bs, lq, hh, p, d), jnp.float32)
        for dx in (0, 1):
            for dy in (0, 1):
                xi = x0 + dx
                yi = y0 + dy
                wx = lxw if dx == 1 else (1.0 - lxw)
                wy = lyw if dy == 1 else (1.0 - lyw)
                valid = (xi >= 0) & (xi < wid) & (yi >= 0) & (yi < hgt)
                xi_c = jnp.clip(xi.astype(jnp.int32), 0, wid - 1)
                yi_c = jnp.clip(yi.astype(jnp.int32), 0, hgt - 1)
                vals = v[b_idx, yi_c, xi_c, h_idx]
                w = (wx * wy * valid.astype(jnp.float32))[..., None]
                sampled = sampled + w * vals
        sv_levels.append(sampled)
        out = out + jnp.sum(attn[:, :, :, lvl, :, None] * sampled, axis=3)

    output = jnp.dot(out.reshape(bs, lq, c), params["w_out"], precision=hp) + params["b_out"]
    sv = jnp.stack(sv_levels, axis=3)                               # [bs, Lq, Hh, L, P, D]
    sv = jnp.transpose(sv, (0, 2, 5, 1, 3, 4)).reshape(bs * hh, d, lq, n_lvl, p)
    return output, sv


# ------------------------------------- main -----------------------------------------
if __name__ == "__main__":
    embed_dim, num_heads, num_levels, num_points = 32, 4, 3, 2
    bs, len_q = 2, 8
    spatial_shapes = [(12, 12), (8, 8), (4, 4)]
    len_v = sum(h * w for h, w in spatial_shapes)

    key = jax.random.PRNGKey(0)
    k_q, k_v, k_r, k_p = jax.random.split(key, 4)
    params = make_params(k_p, embed_dim, num_heads, num_levels, num_points)

    query = jax.random.normal(k_q, (bs, len_q, embed_dim), jnp.float32)
    value = jax.random.normal(k_v, (bs, len_v, embed_dim), jnp.float32)
    reference_points = jax.random.uniform(k_r, (bs, len_q, num_levels, 2), jnp.float32)

    # small chunk / tile sizes so the multi-chunk accumulation, padded final chunk,
    # level-folded grid, and multi-tile linear paths are all exercised at toy shapes.
    out, sv = msdeform_attention_forward(
        params, query, reference_points, value, spatial_shapes, None,
        num_heads=num_heads, num_levels=num_levels, num_points=num_points,
        hw_chunk=128, linear_tile_m=64)
    jax.block_until_ready((out, sv))

    ref_out, ref_sv = reference_forward(
        params, query, reference_points, value, spatial_shapes,
        num_heads=num_heads, num_levels=num_levels, num_points=num_points)

    assert out.shape == (bs, len_q, embed_dim)
    assert sv.shape == (bs * num_heads, embed_dim // num_heads, len_q, num_levels, num_points)
    err_o = float(jnp.max(jnp.abs(out - ref_out)))
    err_s = float(jnp.max(jnp.abs(sv - ref_sv)))
    # bf16 MXU operands (f32 accumulation) set the tolerance scale; a genuine
    # indexing / weighting bug would produce O(1) errors.
    TOL = 8e-2
    if not bool(jnp.all(jnp.isfinite(out))) or err_o > TOL or err_s > TOL:
        raise AssertionError(f"mismatch vs reference: out={err_o} sampling_values={err_s}")
    print("KERNEL_OK")
</pallas_src>

<mosaic_0001>
module attributes {stable_mosaic.version = 11 : i64} {
  func.func @_linear_kernel(%arg0: i32, %arg1: memref<64x32xbf16, #tpu.memory_space<vmem>>, %arg2: memref<32x32xbf16, #tpu.memory_space<vmem>>, %arg3: memref<1x32xf32, #tpu.memory_space<vmem>>, %arg4: memref<64x32xbf16, #tpu.memory_space<vmem>>) attributes {dimension_semantics = [#tpu.dimension_semantics<parallel>], iteration_bounds = array<i64: 7>, scalar_prefetch = 0 : i64, scratch_operands = 0 : i64, tpu.core_type = #tpu.core_type<tc>, window_params = [{transform_indices = @transform_0, window_bounds = array<i64: 64, 32>}, {pipeline_mode = #tpu.pipeline_mode<synchronous>, transform_indices = @transform_1, window_bounds = array<i64: 32, 32>}, {pipeline_mode = #tpu.pipeline_mode<synchronous>, transform_indices = @transform_2, window_bounds = array<i64: 1, 32>}, {transform_indices = @transform_3, window_bounds = array<i64: 64, 32>}]} {
    %c0 = arith.constant 0 : index
    %c0_0 = arith.constant 0 : index
    %0 = vector.load %arg1[%c0, %c0_0] : memref<64x32xbf16, #tpu.memory_space<vmem>>, vector<64x32xbf16>
    %c0_1 = arith.constant 0 : index
    %c0_2 = arith.constant 0 : index
    %1 = vector.load %arg2[%c0_1, %c0_2] : memref<32x32xbf16, #tpu.memory_space<vmem>>, vector<32x32xbf16>
    %cst = arith.constant dense<0.000000e+00> : vector<64x32xf32>
    %2 = tpu.matmul %0, %1, %cst {dimension_numbers = #tpu.dot_dimension_numbers<[1], [0], [0], [1], [0, 0, 1, 1], [], []>} : vector<64x32xbf16>, vector<32x32xbf16>, vector<64x32xf32> -> vector<64x32xf32>
    %c0_3 = arith.constant 0 : index
    %c0_4 = arith.constant 0 : index
    %3 = vector.load %arg3[%c0_3, %c0_4] : memref<1x32xf32, #tpu.memory_space<vmem>>, vector<1x32xf32>
    %4 = vector.broadcast %3 : vector<1x32xf32> to vector<64x32xf32>
    %5 = arith.addf %2, %4 : vector<64x32xf32>
    %6 = arith.truncf %5 : vector<64x32xf32> to vector<64x32xbf16>
    %c0_5 = arith.constant 0 : index
    %c0_6 = arith.constant 0 : index
    %7 = vector.load %arg4[%c0_5, %c0_6] : memref<64x32xbf16, #tpu.memory_space<vmem>>, vector<64x32xbf16>
    tpu.vector_store %arg4[%c0_5, %c0_6], %6 {strides = array<i32>} : memref<64x32xbf16, #tpu.memory_space<vmem>>, vector<64x32xbf16>,
    return
  }
  func.func @transform_0(%arg0: i32) -> (i32, i32) {
    %c0_i32 = arith.constant 0 : i32
    %c0_i32_0 = arith.constant 0 : i32
    return %arg0, %c0_i32 : i32, i32
  }
  func.func @transform_1(%arg0: i32) -> (i32, i32) {
    %c0_i32 = arith.constant 0 : i32
    %c0_i32_0 = arith.constant 0 : i32
    %c0_i32_1 = arith.constant 0 : i32
    return %c0_i32, %c0_i32_0 : i32, i32
  }
  func.func @transform_2(%arg0: i32) -> (i32, i32) {
    %c0_i32 = arith.constant 0 : i32
    %c0_i32_0 = arith.constant 0 : i32
    %c0_i32_1 = arith.constant 0 : i32
    return %c0_i32, %c0_i32_0 : i32, i32
  }
  func.func @transform_3(%arg0: i32) -> (i32, i32) {
    %c0_i32 = arith.constant 0 : i32
    %c0_i32_0 = arith.constant 0 : i32
    return %arg0, %c0_i32 : i32, i32
  }
}

</mosaic_0001>

<llo_original>
// kernel: tpu_custom_call.1
$region0: #{tpu_custom_call.1}
  #allocation0 [shape = 'u32[]', space=smem, size = 0x4, offset = 0x4, fixed_abs, tag = 'smem constant byte address 0x4 - core index']
  #allocation1 [shape = 'u32[144,128]{1,0:T(1,128)}', space=vmem, size = 0x12000, scoped, tag = 'internal scratch']
  %s0 = inlined_call_operand.vmem [shape: bf16[448,32], index: 0, kind: input, shape index: {}]
  %s1 = inlined_call_operand.vmem [shape: bf16[32,32], index: 1, kind: input, shape index: {}]
  %s2 = inlined_call_operand.vmem [shape: f32[1,32], index: 2, kind: input, shape index: {}]
  %s3 = inlined_call_operand.vmem [shape: bf16[448,32], index: 3, kind: output, shape index: {}]
  %s4 = sld [smem:[#allocation0]]
  $region45: #{tpu_custom_call.1} parent=0
    _
  %s6 = ssub.s32 1, %s4
  %s7 = scalar_select 0, %s6, %s4
  loop: start=0, step=1, limit=9
  $region2: #{tpu_custom_call.1} parent=0 // loop_pre_header
    _
  $region3: #{tpu_custom_call.1} parent=0 // loop_header
    %s9 = sphi 0, %s13
    %p10 = scmp.ge.s32.totalorder %s9, 9
    %s19 = sphi 0, %s21
    %s22 = sphi 0, %s19
    %s23 = sphi 0, %s22
    %s39 = sphi 0, %s23
    %s43 = sphi 0, %s43
    %s45 = sphi 0, %s43
    %s46 = sphi 0, %s45
    %s60 = sphi 0, %s46
    %s64 = sphi 0, %s64
    %s66 = sphi 0, %s64
    %s67 = sphi 0, %s66
    %s81 = sphi 0, %s67
    %s87 = sphi 0, %s89
    %s90 = sphi 0, %s87
    %s91 = sphi 0, %s90
    %s107 = sphi 0, %s91
  $region4: #{tpu_custom_call.1} parent=0 // loop_header_branch
    %12 = sbr.rel (%p10) target = $region8
  $region5: #{tpu_custom_call.1} parent=0 // loop_body
    %s14 = ssub.s32 %s9, 1
    %s15 = ssub.s32 %s9, 2
    %s16 = sadd.s32 %s9, 1
    %s17 = ssub.s32 %s9, %s16
    %p18 = scmp.eq.s32.totalorder %s17, 0
    %s20 = sadd.s32 %s19, 1
    %s21 = scalar_select %p18, %s19, %s20
    %p24 = pneg %p18
    %p25 = scmp.eq.s32.totalorder %s9, 6
    %p26 = por %p24, %p25
    %p27 = scmp.ne.s32.totalorder %s19, %s22
    %p28 = scmp.eq.s32.totalorder %s9, 0
    %p29 = por %p27, %p28
    %p30 = scmp.ne.s32.totalorder %s19, %s22
    %p31 = scmp.eq.s32.totalorder %s14, 6
    %p32 = por %p30, %p31
    %p33 = scmp.ne.s32.totalorder %s22, %s23
    %p34 = scmp.eq.s32.totalorder %s14, 0
    %p35 = por %p33, %p34
    %p36 = scmp.ne.s32.totalorder %s22, %s23
    %p37 = scmp.eq.s32.totalorder %s15, 6
    %p38 = por %p36, %p37
    %p40 = scmp.ne.s32.totalorder %s23, %s39
    %p41 = scmp.eq.s32.totalorder %s15, 0
    %p42 = por %p40, %p41
    %s44 = sadd.s32 %s43, 1
    %p47 = scmp.eq.s32.totalorder %s9, 6
    %p48 = scmp.ne.s32.totalorder %s43, %s45
    %p49 = scmp.eq.s32.totalorder %s9, 0
    %p50 = por %p48, %p49
    %p51 = scmp.ne.s32.totalorder %s43, %s45
    %p52 = scmp.eq.s32.totalorder %s14, 6
    %p53 = por %p51, %p52
    %p54 = scmp.ne.s32.totalorder %s45, %s46
    %p55 = scmp.eq.s32.totalorder %s14, 0
    %p56 = por %p54, %p55
    %p57 = scmp.ne.s32.totalorder %s45, %s46
    %p58 = scmp.eq.s32.totalorder %s15, 6
    %p59 = por %p57, %p58
    %p61 = scmp.ne.s32.totalorder %s46, %s60
    %p62 = scmp.eq.s32.totalorder %s15, 0
    %p63 = por %p61, %p62
    %s65 = sadd.s32 %s64, 1
    %p68 = scmp.eq.s32.totalorder %s9, 6
    %p69 = scmp.ne.s32.totalorder %s64, %s66
    %p70 = scmp.eq.s32.totalorder %s9, 0
    %p71 = por %p69, %p70
    %p72 = scmp.ne.s32.totalorder %s64, %s66
    %p73 = scmp.eq.s32.totalorder %s14, 6
    %p74 = por %p72, %p73
    %p75 = scmp.ne.s32.totalorder %s66, %s67
    %p76 = scmp.eq.s32.totalorder %s14, 0
    %p77 = por %p75, %p76
    %p78 = scmp.ne.s32.totalorder %s66, %s67
    %p79 = scmp.eq.s32.totalorder %s15, 6
    %p80 = por %p78, %p79
    %p82 = scmp.ne.s32.totalorder %s67, %s81
    %p83 = scmp.eq.s32.totalorder %s15, 0
    %p84 = por %p82, %p83
    %s85 = ssub.s32 %s9, %s16
    %p86 = scmp.eq.s32.totalorder %s85, 0
    %s88 = sadd.s32 %s87, 1
    %s89 = scalar_select %p86, %s87, %s88
    %p92 = pneg %p86
    %p93 = scmp.eq.s32.totalorder %s9, 6
    %p94 = por %p92, %p93
    %p95 = scmp.ne.s32.totalorder %s87, %s90
    %p96 = scmp.eq.s32.totalorder %s9, 0
    %p97 = por %p95, %p96
    %p98 = scmp.ne.s32.totalorder %s87, %s90
    %p99 = scmp.eq.s32.totalorder %s14, 6
    %p100 = por %p98, %p99
    %p101 = scmp.ne.s32.totalorder %s90, %s91
    %p102 = scmp.eq.s32.totalorder %s14, 0
    %p103 = por %p101, %p102
    %p104 = scmp.ne.s32.totalorder %s90, %s91
    %p105 = scmp.eq.s32.totalorder %s15, 6
    %p106 = por %p104, %p105
    %p108 = scmp.ne.s32.totalorder %s91, %s107
    %p109 = scmp.eq.s32.totalorder %s15, 0
    %p110 = por %p108, %p109
    %p111 = scmp.le.s32.totalorder 1, %s9
    %p112 = scmp.lt.s32.totalorder %s9, 8
    %p113 = pnand %p111, %p112
    %p114 = pneg %p113
    // Predicated region
    $region9: #{tpu_custom_call.1} parent=5 // pred_check
      _
    $region10: #{tpu_custom_call.1} parent=5 // pred_check_branch
      %116 = sbr.rel (%p113) target = $region12
    $region11: #{tpu_custom_call.1} parent=5 // pred_region
      %s117 = ssub.s32 %s9, 1
      // Predicated region
      $region13: #{tpu_custom_call.1} parent=11 // pred_check
        %p118 = pneg %p56
      $region14: #{tpu_custom_call.1} parent=11 // pred_check_branch
        %120 = sbr.rel (%p118) target = $region16
      $region15: #{tpu_custom_call.1} parent=11 // pred_region
        _
      $region16: #{tpu_custom_call.1} parent=11 // pred_fallthru
        _
      // Predicated region
      $region17: #{tpu_custom_call.1} parent=11 // pred_check
        %p121 = pneg %p77
      $region18: #{tpu_custom_call.1} parent=11 // pred_check_branch
        %123 = sbr.rel (%p121) target = $region20
      $region19: #{tpu_custom_call.1} parent=11 // pred_region
        _
      $region20: #{tpu_custom_call.1} parent=11 // pred_fallthru
        _
    $region12: #{tpu_custom_call.1} parent=5 // pred_fallthru
      _
    %p124 = scmp.lt.s32.totalorder %s9, 7
    // Predicated region
    $region21: #{tpu_custom_call.1} parent=5 // pred_check
      %p125 = pneg %p124
    $region22: #{tpu_custom_call.1} parent=5 // pred_check_branch
      %127 = sbr.rel (%p125) target = $region24
    $region23: #{tpu_custom_call.1} parent=5 // pred_region
      // Predicated region
      $region25: #{tpu_custom_call.1} parent=23 // pred_check
        %p128 = pneg %p29
      $region26: #{tpu_custom_call.1} parent=23 // pred_check_branch
        %130 = sbr.rel (%p128) target = $region28
      $region27: #{tpu_custom_call.1} parent=23 // pred_region
        %s131 = smul.u32 8, %s9
        %p132 = scmp.lt.s32.totalorder %s131, 55
        %s133 = scalar_select %p132, %s131, 55
        %s134 = smul.addr %s133, 4
        %s135 = scalar_lea.vmem %s0, %s134
        %s136 = smul.u32 8, %s9
      $region28: #{tpu_custom_call.1} parent=23 // pred_fallthru
        _
    $region24: #{tpu_custom_call.1} parent=5 // pred_fallthru
      _
    %p137 = scmp.le.s32.totalorder 1, %s9
    %p138 = scmp.lt.s32.totalorder %s9, 8
    %p139 = pnand %p137, %p138
    %p140 = pneg %p139
    // Predicated region
    $region29: #{tpu_custom_call.1} parent=5 // pred_check
      _
    $region30: #{tpu_custom_call.1} parent=5 // pred_check_branch
      %142 = sbr.rel (%p139) target = $region32
    $region31: #{tpu_custom_call.1} parent=5 // pred_region
      %s143 = ssub.s32 %s9, 1
      %s144 = smul.u32 8, %s14
      %p145 = scmp.lt.s32.totalorder %s144, 55
      %s146 = scalar_select %p145, %s144, 55
      %s147 = smul.addr %s146, 4
      %s148 = scalar_lea.vmem %s0, %s147
      %p149 = pneg %p35
      %p150 = pneg %p32
      %p151 = pneg %p56
      %p152 = pneg %p53
      %p153 = pneg %p77
      %p154 = pneg %p74
      %p155 = pneg %p103
      %p156 = pneg %p100
      %s157 = smul.u32 8, %s14
      %p158 = scmp.lt.s32.totalorder %s157, 55
      %s159 = scalar_select %p158, %s157, 55
      %s160 = smul.addr %s159, 4
      %s161 = scalar_lea.vmem %s3, %s160
      %s162 = smul.u32 8, %s14
      %p163 = scmp.lt.s32.totalorder %s162, 55
      %s164 = scalar_select %p163, %s162, 55
      %s165 = smul.addr %s164, 4
      %s166 = scalar_lea.vmem %s0, %s165
      %s167 = smul.u32 8, %s14
      %s168 = smul.u32 8, %s14
      %p169 = scmp.lt.s32.totalorder %s168, 55
      %s170 = scalar_select %p169, %s168, 55
      %s171 = smul.addr %s170, 4
      %s172 = scalar_lea.vmem %s3, %s171
      %s173 = smul.u32 8, %s14
      %v175 = vld [vmem:[%s166] sm:$0xf]
      %v176 = vld [vmem:[%s166 + $0x4] sm:$0xf]
      %v177 = vld [vmem:[%s166 + $0x8] sm:$0xf]
      %v178 = vld [vmem:[%s166 + $0xc] sm:$0xf]
      %v179 = vld [vmem:[%s166 + $0x10] sm:$0xf]
      %v180 = vld [vmem:[%s166 + $0x14] sm:$0xf]
      %v181 = vld [vmem:[%s166 + $0x18] sm:$0xf]
      %v182 = vld [vmem:[%s166 + $0x1c] sm:$0xf]
      %v183 = vld [vmem:[%s1] sm:$0xf]
      %v184 = vld [vmem:[%s1 + $0x4] sm:$0xf]
      %v185 = vld [vmem:[%s1 + $0x8] sm:$0xf]
      %v186 = vld [vmem:[%s1 + $0xc] sm:$0xf]
      %v187 = vld [vmem:[%s2] sm:$0x1]
      %v189 = vlaneseq
      %v190 = vshrl.u32 %v189, 7
      %v191 = vsub.s32 0, %v190
      %v192 = vrot.slane %v187, %v191
      %v202 = vunpack.c.l.b16 %v175
      %v203 = vunpack.c.l.b16 %v176
      %v204 = vunpack.c.l.b16 %v177
      %v205 = vunpack.c.l.b16 %v178
      %v206 = vunpack.c.l.b16 %v179
      %v207 = vunpack.c.l.b16 %v180
      %v208 = vunpack.c.l.b16 %v181
      %v209 = vunpack.c.l.b16 %v182
      %v210 = vpack.c.b16 %v203, %v202
      %v211 = vpack.c.b16 %v205, %v204
      %v212 = vpack.c.b16 %v207, %v206
      %v213 = vpack.c.b16 %v209, %v208
      %v218 = vunpack.c.l.b16 %v183
      %v219 = vunpack.c.l.b16 %v184
      %v220 = vunpack.c.l.b16 %v185
      %v221 = vunpack.c.l.b16 %v186
      %v222 = vpack.c.b16 %v219, %v218
      %v223 = vpack.c.b16 %v221, %v220
      %vm226 = vcmask 261120
      %v228 = vsel %vm226, %v210, 0
      %v231 = vsel %vm226, %v211, 0
      %v234 = vsel %vm226, %v212, 0
      %v237 = vsel %vm226, %v213, 0
      %239 = vmatprep.subr.bf16.mxu0 0
      %240 = vmatpush1.bf16.msra.mxu0 0
      %241 = vmatprep.subr.bf16.mxu0 0
      %242 = vmatpush1.bf16.msra.mxu0 0
      %243 = vmatprep.subr.bf16.mxu0 0
      %244 = vmatpush1.bf16.msra.mxu0 0
      %245 = vmatprep.subr.bf16.mxu0 0
      %246 = vmatpush1.bf16.msra.mxu0 0
      %247 = vmatprep.subr.bf16.mxu0 0
      %248 = vmatpush1.bf16.msra.mxu0 0
      %249 = vmatprep.subr.bf16.mxu0 0
      %250 = vmatpush1.bf16.msra.mxu0 0
      %251 = vmatprep.subr.bf16.mxu0 0
      %252 = vmatpush1.bf16.msra.mxu0 %v223
      %253 = vmatprep.subr.bf16.mxu0 0
      %254 = vmatpush1.bf16.msra.mxu0 %v222
      %255 = vmatprep.subr.bf16.mxu0 0
      %256 = vmatpush2.bf16.msra.mxu0 0
      %257 = vmatprep.subr.bf16.mxu0 0
      %258 = vmatpush2.bf16.msra.mxu0 0
      %259 = vmatprep.subr.bf16.mxu0 0
      %260 = vmatpush2.bf16.msra.mxu0 0
      %261 = vmatprep.subr.bf16.mxu0 0
      %262 = vmatpush2.bf16.msra.mxu0 0
      %263 = vmatprep.subr.bf16.mxu0 0
      %264 = vmatpush2.bf16.msra.mxu0 0
      %265 = vmatprep.subr.bf16.mxu0 0
      %266 = vmatpush2.bf16.msra.mxu0 0
      %267 = vmatprep.subr.bf16.mxu0 0
      %268 = vmatpush2.bf16.msra.mxu0 0
      %269 = vmatprep.subr.bf16.mxu0 0
      %270 = vmatpush2.bf16.msra.mxu0 0
      %271 = vmatprep.mubr.bf16.mxu0 0
      %272 = vmatmul.mubr.bf16.gmra.mxu0 %v228
      %v273 = vpop.f32.mrf.mxu0
      %v274 = vadd.f32 %v192, %v273
      %v275 = vpop.f32.mrf.mxu0
      %v276 = vpop.f32.mrf.mxu0
      %v277 = vadd.f32 %v192, %v276
      %v278 = vpop.f32.mrf.mxu0
      %279 = vmatprep.mubr.bf16.mxu0 0
      %280 = vmatmul.mubr.bf16.gmra.mxu0 %v231
      %v281 = vpop.f32.mrf.mxu0
      %v282 = vadd.f32 %v192, %v281
      %v283 = vpop.f32.mrf.mxu0
      %v284 = vpop.f32.mrf.mxu0
      %v285 = vadd.f32 %v192, %v284
      %v286 = vpop.f32.mrf.mxu0
      %287 = vmatprep.mubr.bf16.mxu0 0
      %288 = vmatmul.mubr.bf16.gmra.mxu0 %v234
      %v289 = vpop.f32.mrf.mxu0
      %v290 = vadd.f32 %v192, %v289
      %v291 = vpop.f32.mrf.mxu0
      %v292 = vpop.f32.mrf.mxu0
      %v293 = vadd.f32 %v192, %v292
      %v294 = vpop.f32.mrf.mxu0
      %295 = vmatprep.mubr.bf16.mxu0 0
      %296 = vmatmul.mubr.bf16.gmra.mxu0 %v237
      %v297 = vpop.f32.mrf.mxu0
      %v298 = vadd.f32 %v192, %v297
      %v299 = vpop.f32.mrf.mxu0
      %v300 = vpop.f32.mrf.mxu0
      %v301 = vadd.f32 %v192, %v300
      %v302 = vpop.f32.mrf.mxu0
      %303 = vdwg.mxu0
      %v304 = vpack.c.bf16 %v277, %v274
      %v305 = vpack.c.bf16 %v285, %v282
      %v306 = vpack.c.bf16 %v293, %v290
      %v307 = vpack.c.bf16 %v301, %v298
      %v312 = vunpack.c.l.b16 %v304
      %v313 = vunpack.c.h.b16 %v304
      %v314 = vunpack.c.l.b16 %v305
      %v315 = vunpack.c.h.b16 %v305
      %v316 = vunpack.c.l.b16 %v306
      %v317 = vunpack.c.h.b16 %v306
      %v318 = vunpack.c.l.b16 %v307
      %v319 = vunpack.c.h.b16 %v307
      %v320 = vpack.c.b16 %v312, %v312
      %v321 = vpack.c.b16 %v313, %v313
      %v322 = vpack.c.b16 %v314, %v314
      %v323 = vpack.c.b16 %v315, %v315
      %v324 = vpack.c.b16 %v316, %v316
      %v325 = vpack.c.b16 %v317, %v317
      %v326 = vpack.c.b16 %v318, %v318
      %v327 = vpack.c.b16 %v319, %v319
      %vm336 = vcmask 257024
      %337 = vst.msk [vmem:[%s172] sm:$0xf] %vm336, %v320
      %338 = vst.msk [vmem:[%s172 + $0x4] sm:$0xf] %vm336, %v321
      %339 = vst.msk [vmem:[%s172 + $0x8] sm:$0xf] %vm336, %v322
      %340 = vst.msk [vmem:[%s172 + $0xc] sm:$0xf] %vm336, %v323
      %341 = vst.msk [vmem:[%s172 + $0x10] sm:$0xf] %vm336, %v324
      %342 = vst.msk [vmem:[%s172 + $0x14] sm:$0xf] %vm336, %v325
      %343 = vst.msk [vmem:[%s172 + $0x18] sm:$0xf] %vm336, %v326
      %344 = vst.msk [vmem:[%s172 + $0x1c] sm:$0xf] %vm336, %v327
      %s345 = smul.u32 8, %s14
      %p346 = scmp.lt.s32.totalorder %s345, 55
      %s347 = scalar_select %p346, %s345, 55
      %s348 = smul.addr %s347, 4
      %s349 = scalar_lea.vmem %s3, %s348
      // Predicated region
      $region33: #{tpu_custom_call.1} parent=31 // pred_check
        %p350 = pneg %p100
      $region34: #{tpu_custom_call.1} parent=31 // pred_check_branch
        %352 = sbr.rel (%p350) target = $region36
      $region35: #{tpu_custom_call.1} parent=31 // pred_region
        %s353 = smul.u32 8, %s14
      $region36: #{tpu_custom_call.1} parent=31 // pred_fallthru
        _
    $region32: #{tpu_custom_call.1} parent=5 // pred_fallthru
      _
    %p354 = scmp.le.s32.totalorder 2, %s9
    // Predicated region
    $region37: #{tpu_custom_call.1} parent=5 // pred_check
      %p355 = pneg %p354
    $region38: #{tpu_custom_call.1} parent=5 // pred_check_branch
      %357 = sbr.rel (%p355) target = $region40
    $region39: #{tpu_custom_call.1} parent=5 // pred_region
      %s358 = ssub.s32 %s9, 2
      // Predicated region
      $region41: #{tpu_custom_call.1} parent=39 // pred_check
        %p359 = pneg %p106
      $region42: #{tpu_custom_call.1} parent=39 // pred_check_branch
        %361 = sbr.rel (%p359) target = $region44
      $region43: #{tpu_custom_call.1} parent=39 // pred_region
        %s362 = smul.u32 8, %s15
        %p363 = scmp.lt.s32.totalorder %s362, 55
        %s364 = scalar_select %p363, %s362, 55
        %s365 = smul.addr %s364, 4
        %s366 = scalar_lea.vmem %s3, %s365
      $region44: #{tpu_custom_call.1} parent=39 // pred_fallthru
        _
    $region40: #{tpu_custom_call.1} parent=5 // pred_fallthru
      _
  $region6: #{tpu_custom_call.1} parent=0 // loop_footer
    %s13 = sadd.s32 1, %s9
  $region7: #{tpu_custom_call.1} parent=0 // loop_footer_branch
    %8 = sbr.rel target = $region3
  $region8: #{tpu_custom_call.1} parent=0 // loop_exit
    _

</llo_original>
